<compile_context>
chip_gen: v7x
topology: tpu7x:2x2x1
jax: 0.10.0
libtpu: 0.0.40
codegen_flags: <defaults>
</compile_context>

<pallas_src>
import jax
import jax.numpy as jnp
from jax.experimental import pallas as pl
from jax.experimental.pallas import tpu as pltpu


def _round_up(n, m):
    return ((n + m - 1) // m) * m


def net_kernel(x_ref, w1_ref, b1_ref, w3_ref, b3_ref, w4_ref, b4_ref, o_ref):
    # x_ref : (TILE_R, P*D)   packed input (P batch rows per VMEM row)
    # w1_ref: (P*D, P*16)     block-diagonal fc1 weight
    # w3_ref: (P*16, P*16)    block-diagonal fc3 weight
    # w4_ref: (P*16, P)       striped fc4 weight (column j = w4 for sub-row j)
    # b*_ref: f32 biases tiled across the P sub-rows
    # o_ref : (TILE_R, P)     f32 probabilities (batch-major when flattened)
    x = x_ref[...]

    # fc1 + relu (f32 accumulation on the MXU regardless of input dtype)
    h = jnp.dot(x, w1_ref[...], preferred_element_type=jnp.float32) + b1_ref[...]
    h = jnp.maximum(h, 0.0)

    # dropout1: nn.Dropout2d is identity at inference time (eval mode).
    # TODO(synk): training-mode stochastic dropout not implemented.

    # fc3 + relu
    h = jnp.dot(h.astype(w3_ref.dtype), w3_ref[...],
                preferred_element_type=jnp.float32) + b3_ref[...]
    h = jnp.maximum(h, 0.0)

    # fc4 + sigmoid: contracts the first dim of w4p -> plain MXU matmul,
    # no lane-dim contraction / XLU transpose of the activation.
    z = jnp.dot(h.astype(w4_ref.dtype), w4_ref[...],
                preferred_element_type=jnp.float32) + b4_ref[...]
    o_ref[...] = jax.nn.sigmoid(z)


def _const_spec(shape):
    nd = len(shape)
    return pl.BlockSpec(shape, lambda i, _nd=nd: (0,) * _nd)


def _block_diag(w, p):
    """p copies of w along the block diagonal: (din, dout) -> (p*din, p*dout)."""
    return jnp.kron(jnp.eye(p, dtype=w.dtype), w)


# Cap on the batch tile, in *packed* rows.  With P = 128//D = 4 this is 8192
# logical batch rows per grid step; double-buffered x is then 2 MiB f32.
_DEFAULT_TILE_ROWS_CAP = 2048
_MIN_ROWS = 8            # sublane granularity for the block's second-minor dim
_SPLIT_THRESHOLD = 512   # packed rows; above this, use >=2 grid steps (v7x megacore)


def net_forward(x, w1, b1, w3, b3, w4, b4, *, tile_rows=None):
    """Run the Net forward pass.  Returns (B, 1) f32 probabilities.

    x : (B, D) float32 or bfloat16 -- x is never recast here; supply bf16
        upstream if you want the half-bandwidth input path.
    w1: (D, 16)  w3: (16, 16)  w4: (16, 1)   (in_features, out_features)
    b1: (1, 16)  b3: (1, 16)   b4: (1, 1)
    """
    B, D = x.shape
    assert w1.shape == (D, 16) and w3.shape == (16, 16) and w4.shape == (16, 1)

    # Pack P batch rows per lane row so a narrow D is lane-dense in HBM/VMEM.
    P = max(1, 128 // D)
    rows = pl.cdiv(B, P)                           # packed rows needed

    if tile_rows is None:
        if rows <= _SPLIT_THRESHOLD:
            tile_rows = _round_up(rows, _MIN_ROWS)
        else:
            # >= 2 grid steps so v7x can shard the batch across both TCs;
            # cap the tile so double-buffered x stays small on every chip.
            tile_rows = min(_DEFAULT_TILE_ROWS_CAP,
                            _round_up(pl.cdiv(rows, 2), _MIN_ROWS))
    assert tile_rows % _MIN_ROWS == 0, "tile_rows must be a multiple of 8"

    packed_rows = _round_up(rows, tile_rows)
    padded_b = packed_rows * P
    grid = (packed_rows // tile_rows,)

    if padded_b != B:
        x = jnp.pad(x, ((0, padded_b - B), (0, 0)))
    xp = x.reshape(packed_rows, P * D)             # contiguous reshape, no copy

    # Block-diagonal / striped weights keep the P packed sub-rows independent.
    dt = x.dtype
    w1p = _block_diag(w1, P).astype(dt)                      # (P*D, P*16)
    w3p = _block_diag(w3, P).astype(dt)                      # (P*16, P*16)
    w4p = _block_diag(w4, P).astype(dt)                      # (P*16, P)
    b1p = jnp.tile(b1.astype(jnp.float32), (1, P))           # (1, P*16)
    b3p = jnp.tile(b3.astype(jnp.float32), (1, P))           # (1, P*16)
    b4p = jnp.tile(b4.astype(jnp.float32), (1, P))           # (1, P)

    itemsize = jnp.dtype(dt).itemsize
    flops = 2 * packed_rows * ((P * D) * (P * 16)
                               + (P * 16) * (P * 16)
                               + (P * 16) * P)
    bytes_accessed = (packed_rows * P * D * itemsize
                      + sum(int(a.size) * jnp.dtype(a.dtype).itemsize
                            for a in (w1p, b1p, w3p, b3p, w4p, b4p))
                      + packed_rows * P * 4)
    cost = pl.CostEstimate(flops=flops, transcendentals=padded_b,
                           bytes_accessed=bytes_accessed)

    out = pl.pallas_call(
        net_kernel,
        out_shape=jax.ShapeDtypeStruct((packed_rows, P), jnp.float32),
        grid_spec=pltpu.PrefetchScalarGridSpec(
            num_scalar_prefetch=0,
            grid=grid,
            in_specs=[
                pl.BlockSpec((tile_rows, P * D), lambda i: (i, 0)),  # streamed x
                _const_spec(w1p.shape), _const_spec(b1p.shape),      # resident
                _const_spec(w3p.shape), _const_spec(b3p.shape),
                _const_spec(w4p.shape), _const_spec(b4p.shape),
            ],
            out_specs=pl.BlockSpec((tile_rows, P), lambda i: (i, 0)),
        ),
        compiler_params=pltpu.CompilerParams(
            dimension_semantics=("parallel",)),
        cost_estimate=cost,
    )(xp, w1p, b1p, w3p, b3p, w4p, b4p)

    # The packed output is already batch-major, so this reshape is a free
    # contiguous view; only the tiny [:B] slice copies.
    return out.reshape(padded_b, 1)[:B]


def init_params(key, input_dim):
    # Deterministic synthetic init (PyTorch-Linear-like uniform(-1/sqrt(fan_in), +)).
    ks = jax.random.split(key, 6)

    def lin(kw, kb, fan_in, fan_out):
        bound = 1.0 / jnp.sqrt(fan_in)
        w = jax.random.uniform(kw, (fan_in, fan_out), jnp.float32, -bound, bound)
        b = jax.random.uniform(kb, (1, fan_out), jnp.float32, -bound, bound)
        return w, b

    w1, b1 = lin(ks[0], ks[1], input_dim, 16)
    w3, b3 = lin(ks[2], ks[3], 16, 16)
    w4, b4 = lin(ks[4], ks[5], 16, 1)
    return w1, b1, w3, b3, w4, b4


def _reference(x, w1, b1, w3, b3, w4, b4):
    xf = x.astype(jnp.float32)
    h = jnp.maximum(xf @ w1 + b1, 0.0)
    h = jnp.maximum(h @ w3 + b3, 0.0)
    return jax.nn.sigmoid(h @ w4 + b4)


if __name__ == "__main__":
    key = jax.random.PRNGKey(0)
    k_x, k_p = jax.random.split(key)

    input_dim = 32
    batch = 8
    x = jax.random.normal(k_x, (batch, input_dim), dtype=jnp.float32)
    params = init_params(k_p, input_dim)
    ref = _reference(x, *params)

    # f32 path, single tile (tight tolerance).
    out = jax.block_until_ready(net_forward(x, *params))
    assert out.shape == (batch, 1)
    assert jnp.allclose(out, ref, atol=1e-5, rtol=1e-5)

    # Caller-supplied bf16 input (half the x HBM traffic; no wrapper recast).
    out_bf16 = jax.block_until_ready(net_forward(x.astype(jnp.bfloat16), *params))
    assert jnp.allclose(out_bf16, ref, atol=5e-2, rtol=5e-2)

    # Multi-tile grid + ragged batch (exercises padding + parallel grid axis).
    batch2 = 300
    x2 = jax.random.normal(jax.random.PRNGKey(1), (batch2, input_dim),
                           dtype=jnp.float32)
    out2 = jax.block_until_ready(net_forward(x2, *params, tile_rows=32))
    ref2 = _reference(x2, *params)
    assert out2.shape == (batch2, 1)
    assert jnp.allclose(out2, ref2, atol=1e-5, rtol=1e-5)

    print("KERNEL_OK")
</pallas_src>

<mosaic_0001>
module attributes {stable_mosaic.version = 11 : i64} {
  func.func @net_kernel(%arg0: i32, %arg1: memref<8x128xf32, #tpu.memory_space<vmem>>, %arg2: memref<128x64xf32, #tpu.memory_space<vmem>>, %arg3: memref<1x64xf32, #tpu.memory_space<vmem>>, %arg4: memref<64x64xf32, #tpu.memory_space<vmem>>, %arg5: memref<1x64xf32, #tpu.memory_space<vmem>>, %arg6: memref<64x4xf32, #tpu.memory_space<vmem>>, %arg7: memref<1x4xf32, #tpu.memory_space<vmem>>, %arg8: memref<8x4xf32, #tpu.memory_space<vmem>>) attributes {dimension_semantics = [#tpu.dimension_semantics<parallel>], iteration_bounds = array<i64: 1>, scalar_prefetch = 0 : i64, scratch_operands = 0 : i64, tpu.core_type = #tpu.core_type<tc>, window_params = [{transform_indices = @transform_0, window_bounds = array<i64: 8, 128>}, {pipeline_mode = #tpu.pipeline_mode<synchronous>, transform_indices = @transform_1, window_bounds = array<i64: 128, 64>}, {pipeline_mode = #tpu.pipeline_mode<synchronous>, transform_indices = @transform_2, window_bounds = array<i64: 1, 64>}, {pipeline_mode = #tpu.pipeline_mode<synchronous>, transform_indices = @transform_3, window_bounds = array<i64: 64, 64>}, {pipeline_mode = #tpu.pipeline_mode<synchronous>, transform_indices = @transform_4, window_bounds = array<i64: 1, 64>}, {pipeline_mode = #tpu.pipeline_mode<synchronous>, transform_indices = @transform_5, window_bounds = array<i64: 64, 4>}, {pipeline_mode = #tpu.pipeline_mode<synchronous>, transform_indices = @transform_6, window_bounds = array<i64: 1, 4>}, {transform_indices = @transform_7, window_bounds = array<i64: 8, 4>}]} {
    %c0 = arith.constant 0 : index
    %c0_0 = arith.constant 0 : index
    %0 = vector.load %arg1[%c0, %c0_0] : memref<8x128xf32, #tpu.memory_space<vmem>>, vector<8x128xf32>
    %c0_1 = arith.constant 0 : index
    %c0_2 = arith.constant 0 : index
    %1 = vector.load %arg2[%c0_1, %c0_2] : memref<128x64xf32, #tpu.memory_space<vmem>>, vector<128x64xf32>
    %cst = arith.constant dense<0.000000e+00> : vector<8x64xf32>
    %2 = tpu.matmul %0, %1, %cst {dimension_numbers = #tpu.dot_dimension_numbers<[1], [0], [0], [1], [0, 0, 1, 1], [], []>} : vector<8x128xf32>, vector<128x64xf32>, vector<8x64xf32> -> vector<8x64xf32>
    %c0_3 = arith.constant 0 : index
    %c0_4 = arith.constant 0 : index
    %3 = vector.load %arg3[%c0_3, %c0_4] : memref<1x64xf32, #tpu.memory_space<vmem>>, vector<1x64xf32>
    %4 = vector.broadcast %3 : vector<1x64xf32> to vector<8x64xf32>
    %5 = arith.addf %2, %4 : vector<8x64xf32>
    %cst_5 = arith.constant 0.000000e+00 : f32
    %6 = vector.broadcast %cst_5 : f32 to vector<8x64xf32>
    %7 = arith.maximumf %5, %6 : vector<8x64xf32>
    %c0_6 = arith.constant 0 : index
    %c0_7 = arith.constant 0 : index
    %8 = vector.load %arg4[%c0_6, %c0_7] : memref<64x64xf32, #tpu.memory_space<vmem>>, vector<64x64xf32>
    %cst_8 = arith.constant dense<0.000000e+00> : vector<8x64xf32>
    %9 = tpu.matmul %7, %8, %cst_8 {dimension_numbers = #tpu.dot_dimension_numbers<[1], [0], [0], [1], [0, 0, 1, 1], [], []>} : vector<8x64xf32>, vector<64x64xf32>, vector<8x64xf32> -> vector<8x64xf32>
    %c0_9 = arith.constant 0 : index
    %c0_10 = arith.constant 0 : index
    %10 = vector.load %arg5[%c0_9, %c0_10] : memref<1x64xf32, #tpu.memory_space<vmem>>, vector<1x64xf32>
    %11 = vector.broadcast %10 : vector<1x64xf32> to vector<8x64xf32>
    %12 = arith.addf %9, %11 : vector<8x64xf32>
    %cst_11 = arith.constant 0.000000e+00 : f32
    %13 = vector.broadcast %cst_11 : f32 to vector<8x64xf32>
    %14 = arith.maximumf %12, %13 : vector<8x64xf32>
    %c0_12 = arith.constant 0 : index
    %c0_13 = arith.constant 0 : index
    %15 = vector.load %arg6[%c0_12, %c0_13] : memref<64x4xf32, #tpu.memory_space<vmem>>, vector<64x4xf32>
    %cst_14 = arith.constant dense<0.000000e+00> : vector<8x4xf32>
    %16 = tpu.matmul %14, %15, %cst_14 {dimension_numbers = #tpu.dot_dimension_numbers<[1], [0], [0], [1], [0, 0, 1, 1], [], []>} : vector<8x64xf32>, vector<64x4xf32>, vector<8x4xf32> -> vector<8x4xf32>
    %c0_15 = arith.constant 0 : index
    %c0_16 = arith.constant 0 : index
    %17 = vector.load %arg7[%c0_15, %c0_16] : memref<1x4xf32, #tpu.memory_space<vmem>>, vector<1x4xf32>
    %18 = vector.broadcast %17 : vector<1x4xf32> to vector<8x4xf32>
    %19 = arith.addf %16, %18 : vector<8x4xf32>
    %20 = arith.negf %19 : vector<8x4xf32>
    %21 = math.exp %20 : vector<8x4xf32>
    %cst_17 = arith.constant 1.000000e+00 : f32
    %22 = vector.broadcast %cst_17 : f32 to vector<8x4xf32>
    %23 = arith.addf %22, %21 : vector<8x4xf32>
    %24 = arith.divf %22, %23 : vector<8x4xf32>
    %c0_18 = arith.constant 0 : index
    %c0_19 = arith.constant 0 : index
    %25 = vector.load %arg8[%c0_18, %c0_19] : memref<8x4xf32, #tpu.memory_space<vmem>>, vector<8x4xf32>
    tpu.vector_store %arg8[%c0_18, %c0_19], %24 {strides = array<i32>} : memref<8x4xf32, #tpu.memory_space<vmem>>, vector<8x4xf32>,
    return
  }
  func.func @transform_0(%arg0: i32) -> (i32, i32) {
    %c0_i32 = arith.constant 0 : i32
    %c0_i32_0 = arith.constant 0 : i32
    return %arg0, %c0_i32 : i32, i32
  }
  func.func @transform_1(%arg0: i32) -> (i32, i32) {
    %c0_i32 = arith.constant 0 : i32
    %c0_i32_0 = arith.constant 0 : i32
    %c0_i32_1 = arith.constant 0 : i32
    return %c0_i32, %c0_i32_0 : i32, i32
  }
  func.func @transform_2(%arg0: i32) -> (i32, i32) {
    %c0_i32 = arith.constant 0 : i32
    %c0_i32_0 = arith.constant 0 : i32
    %c0_i32_1 = arith.constant 0 : i32
    return %c0_i32, %c0_i32_0 : i32, i32
  }
  func.func @transform_3(%arg0: i32) -> (i32, i32) {
    %c0_i32 = arith.constant 0 : i32
    %c0_i32_0 = arith.constant 0 : i32
    %c0_i32_1 = arith.constant 0 : i32
    return %c0_i32, %c0_i32_0 : i32, i32
  }
  func.func @transform_4(%arg0: i32) -> (i32, i32) {
    %c0_i32 = arith.constant 0 : i32
    %c0_i32_0 = arith.constant 0 : i32
    %c0_i32_1 = arith.constant 0 : i32
    return %c0_i32, %c0_i32_0 : i32, i32
  }
  func.func @transform_5(%arg0: i32) -> (i32, i32) {
    %c0_i32 = arith.constant 0 : i32
    %c0_i32_0 = arith.constant 0 : i32
    %c0_i32_1 = arith.constant 0 : i32
    return %c0_i32, %c0_i32_0 : i32, i32
  }
  func.func @transform_6(%arg0: i32) -> (i32, i32) {
    %c0_i32 = arith.constant 0 : i32
    %c0_i32_0 = arith.constant 0 : i32
    %c0_i32_1 = arith.constant 0 : i32
    return %c0_i32, %c0_i32_0 : i32, i32
  }
  func.func @transform_7(%arg0: i32) -> (i32, i32) {
    %c0_i32 = arith.constant 0 : i32
    %c0_i32_0 = arith.constant 0 : i32
    return %arg0, %c0_i32 : i32, i32
  }
}

</mosaic_0001>

<llo_original>
// kernel: tpu_custom_call.1
$region0: #{tpu_custom_call.1}
  #allocation0 [shape = 'u32[]', space=smem, size = 0x4, offset = 0x4, fixed_abs, tag = 'smem constant byte address 0x4 - core index']
  #allocation1 [shape = 'u32[144,128]{1,0:T(1,128)}', space=vmem, size = 0x12000, scoped, tag = 'internal scratch']
  %s0 = inlined_call_operand.vmem [shape: f32[8,128], index: 0, kind: input, shape index: {}]
  %s1 = inlined_call_operand.vmem [shape: f32[128,64], index: 1, kind: input, shape index: {}]
  %s2 = inlined_call_operand.vmem [shape: f32[1,64], index: 2, kind: input, shape index: {}]
  %s3 = inlined_call_operand.vmem [shape: f32[64,64], index: 3, kind: input, shape index: {}]
  %s4 = inlined_call_operand.vmem [shape: f32[1,64], index: 4, kind: input, shape index: {}]
  %s5 = inlined_call_operand.vmem [shape: f32[64,4], index: 5, kind: input, shape index: {}]
  %s6 = inlined_call_operand.vmem [shape: f32[1,4], index: 6, kind: input, shape index: {}]
  %s7 = inlined_call_operand.vmem [shape: f32[8,4], index: 7, kind: output, shape index: {}]
  %s8 = sld [smem:[#allocation0]]
  $region38: #{tpu_custom_call.1} parent=0
    _
  %s10 = ssub.s32 1, %s8
  %s11 = scalar_select 0, %s10, %s8
  // Predicated region
  $region2: #{tpu_custom_call.1} parent=0 // pred_check
    _
  $region3: #{tpu_custom_call.1} parent=0 // pred_check_branch
    %13 = sbr.rel (0) target = $region5
  $region4: #{tpu_custom_call.1} parent=0 // pred_region
    _
  $region5: #{tpu_custom_call.1} parent=0 // pred_fallthru
    _
  // Predicated region
  $region6: #{tpu_custom_call.1} parent=0 // pred_check
    _
  $region7: #{tpu_custom_call.1} parent=0 // pred_check_branch
    %15 = sbr.rel (0) target = $region9
  $region8: #{tpu_custom_call.1} parent=0 // pred_region
    _
  $region9: #{tpu_custom_call.1} parent=0 // pred_fallthru
    _
  // Predicated region
  $region10: #{tpu_custom_call.1} parent=0 // pred_check
    _
  $region11: #{tpu_custom_call.1} parent=0 // pred_check_branch
    %17 = sbr.rel (0) target = $region13
  $region12: #{tpu_custom_call.1} parent=0 // pred_region
    _
  $region13: #{tpu_custom_call.1} parent=0 // pred_fallthru
    _
  // Predicated region
  $region14: #{tpu_custom_call.1} parent=0 // pred_check
    _
  $region15: #{tpu_custom_call.1} parent=0 // pred_check_branch
    %19 = sbr.rel (0) target = $region17
  $region16: #{tpu_custom_call.1} parent=0 // pred_region
    _
  $region17: #{tpu_custom_call.1} parent=0 // pred_fallthru
    _
  // Predicated region
  $region18: #{tpu_custom_call.1} parent=0 // pred_check
    _
  $region19: #{tpu_custom_call.1} parent=0 // pred_check_branch
    %21 = sbr.rel (0) target = $region21
  $region20: #{tpu_custom_call.1} parent=0 // pred_region
    _
  $region21: #{tpu_custom_call.1} parent=0 // pred_fallthru
    _
  // Predicated region
  $region22: #{tpu_custom_call.1} parent=0 // pred_check
    _
  $region23: #{tpu_custom_call.1} parent=0 // pred_check_branch
    %23 = sbr.rel (0) target = $region25
  $region24: #{tpu_custom_call.1} parent=0 // pred_region
    _
  $region25: #{tpu_custom_call.1} parent=0 // pred_fallthru
    _
  // Predicated region
  $region26: #{tpu_custom_call.1} parent=0 // pred_check
    _
  $region27: #{tpu_custom_call.1} parent=0 // pred_check_branch
    %25 = sbr.rel (0) target = $region29
  $region28: #{tpu_custom_call.1} parent=0 // pred_region
    _
  $region29: #{tpu_custom_call.1} parent=0 // pred_fallthru
    _
  %v26 = vld [vmem:[%s0] sm:$0xff]
  %v27 = vld [vmem:[%s1] sm:$0xff]
  %v28 = vld [vmem:[%s1 + $0x8] sm:$0xff]
  %v29 = vld [vmem:[%s1 + $0x10] sm:$0xff]
  %v30 = vld [vmem:[%s1 + $0x18] sm:$0xff]
  %v31 = vld [vmem:[%s1 + $0x20] sm:$0xff]
  %v32 = vld [vmem:[%s1 + $0x28] sm:$0xff]
  %v33 = vld [vmem:[%s1 + $0x30] sm:$0xff]
  %v34 = vld [vmem:[%s1 + $0x38] sm:$0xff]
  %v35 = vld [vmem:[%s1 + $0x40] sm:$0xff]
  %v36 = vld [vmem:[%s1 + $0x48] sm:$0xff]
  %v37 = vld [vmem:[%s1 + $0x50] sm:$0xff]
  %v38 = vld [vmem:[%s1 + $0x58] sm:$0xff]
  %v39 = vld [vmem:[%s1 + $0x60] sm:$0xff]
  %v40 = vld [vmem:[%s1 + $0x68] sm:$0xff]
  %v41 = vld [vmem:[%s1 + $0x70] sm:$0xff]
  %v42 = vld [vmem:[%s1 + $0x78] sm:$0xff]
  %v43 = vld [vmem:[%s2] sm:$0x1]
  %v45 = vlaneseq
  %v46 = vshrl.u32 %v45, 7
  %v47 = vsub.s32 0, %v46
  %v48 = vrot.slane %v43, %v47
  %50 = vmatprep.subr.mxu0 0.0
  %51 = vmatpush1.msra.mxu0 %v27
  %52 = vmatprep.subr.mxu0 0.0
  %53 = vmatpush1.msra.mxu0 %v28
  %54 = vmatprep.subr.mxu0 0.0
  %55 = vmatpush1.msra.mxu0 %v29
  %56 = vmatprep.subr.mxu0 0.0
  %57 = vmatpush1.msra.mxu0 %v30
  %58 = vmatprep.subr.mxu0 0.0
  %59 = vmatpush1.msra.mxu0 %v31
  %60 = vmatprep.subr.mxu0 0.0
  %61 = vmatpush1.msra.mxu0 %v32
  %62 = vmatprep.subr.mxu0 0.0
  %63 = vmatpush1.msra.mxu0 %v33
  %64 = vmatprep.subr.mxu0 0.0
  %65 = vmatpush1.msra.mxu0 %v34
  %66 = vmatprep.subr.mxu0 0.0
  %67 = vmatpush1.msra.mxu0 %v35
  %68 = vmatprep.subr.mxu0 0.0
  %69 = vmatpush1.msra.mxu0 %v36
  %70 = vmatprep.subr.mxu0 0.0
  %71 = vmatpush1.msra.mxu0 %v37
  %72 = vmatprep.subr.mxu0 0.0
  %73 = vmatpush1.msra.mxu0 %v38
  %74 = vmatprep.subr.mxu0 0.0
  %75 = vmatpush1.msra.mxu0 %v39
  %76 = vmatprep.subr.mxu0 0.0
  %77 = vmatpush1.msra.mxu0 %v40
  %78 = vmatprep.subr.mxu0 0.0
  %79 = vmatpush1.msra.mxu0 %v41
  %80 = vmatprep.subr.mxu0 0.0
  %81 = vmatpush1.msra.mxu0 %v42
  %82 = vmatprep.subr.mxu0 0.0
  %83 = vmatpush1.msra.mxu0 0.0
  %84 = vmatprep.subr.mxu0 0.0
  %85 = vmatpush1.msra.mxu0 0.0
  %86 = vmatprep.subr.mxu0 0.0
  %87 = vmatpush1.msra.mxu0 0.0
  %88 = vmatprep.subr.mxu0 0.0
  %89 = vmatpush1.msra.mxu0 0.0
  %90 = vmatprep.subr.mxu0 0.0
  %91 = vmatpush1.msra.mxu0 0.0
  %92 = vmatprep.subr.mxu0 0.0
  %93 = vmatpush1.msra.mxu0 0.0
  %94 = vmatprep.subr.mxu0 0.0
  %95 = vmatpush1.msra.mxu0 0.0
  %96 = vmatprep.subr.mxu0 0.0
  %97 = vmatpush1.msra.mxu0 0.0
  %98 = vmatprep.subr.mxu0 0.0
  %99 = vmatpush1.msra.mxu0 0.0
  %100 = vmatprep.subr.mxu0 0.0
  %101 = vmatpush1.msra.mxu0 0.0
  %102 = vmatprep.subr.mxu0 0.0
  %103 = vmatpush1.msra.mxu0 0.0
  %104 = vmatprep.subr.mxu0 0.0
  %105 = vmatpush1.msra.mxu0 0.0
  %106 = vmatprep.subr.mxu0 0.0
  %107 = vmatpush1.msra.mxu0 0.0
  %108 = vmatprep.subr.mxu0 0.0
  %109 = vmatpush1.msra.mxu0 0.0
  %110 = vmatprep.subr.mxu0 0.0
  %111 = vmatpush1.msra.mxu0 0.0
  %112 = vmatprep.subr.mxu0 0.0
  %113 = vmatpush1.msra.mxu0 0.0
  %114 = vmatprep.mubr.f32.mxu0 0.0
  %115 = vmatmul.mubr.f32.gmra.mrb[0].mxu0 %v26
  %v116 = vpop.f32.mrb[0].mxu0
  %v117 = vadd.f32 %v48, %v116
  %v118 = vpop.f32.mrb[0].mxu0
  %119 = vdwg.mxu0
  %v120 = vmax.f32 %v117, 0.0
  %v121 = vld [vmem:[%s3] sm:$0xff]
  %v122 = vld [vmem:[%s3 + $0x8] sm:$0xff]
  %v123 = vld [vmem:[%s3 + $0x10] sm:$0xff]
  %v124 = vld [vmem:[%s3 + $0x18] sm:$0xff]
  %v125 = vld [vmem:[%s3 + $0x20] sm:$0xff]
  %v126 = vld [vmem:[%s3 + $0x28] sm:$0xff]
  %v127 = vld [vmem:[%s3 + $0x30] sm:$0xff]
  %v128 = vld [vmem:[%s3 + $0x38] sm:$0xff]
  %v129 = vld [vmem:[%s4] sm:$0x1]
  %v131 = vlaneseq
  %v132 = vshrl.u32 %v131, 7
  %v133 = vsub.s32 0, %v132
  %v134 = vrot.slane %v129, %v133
  %vm136 = vcmask 523264
  %v138 = vsel %vm136, %v120, 0
  %140 = vmatprep.subr.mxu0 0.0
  %141 = vmatpush1.msra.mxu0 %v121
  %142 = vmatprep.subr.mxu0 0.0
  %143 = vmatpush1.msra.mxu0 %v122
  %144 = vmatprep.subr.mxu0 0.0
  %145 = vmatpush1.msra.mxu0 %v123
  %146 = vmatprep.subr.mxu0 0.0
  %147 = vmatpush1.msra.mxu0 %v124
  %148 = vmatprep.subr.mxu0 0.0
  %149 = vmatpush1.msra.mxu0 %v125
  %150 = vmatprep.subr.mxu0 0.0
  %151 = vmatpush1.msra.mxu0 %v126
  %152 = vmatprep.subr.mxu0 0.0
  %153 = vmatpush1.msra.mxu0 %v127
  %154 = vmatprep.subr.mxu0 0.0
  %155 = vmatpush1.msra.mxu0 %v128
  %156 = vmatprep.subr.mxu0 0.0
  %157 = vmatpush1.msra.mxu0 0.0
  %158 = vmatprep.subr.mxu0 0.0
  %159 = vmatpush1.msra.mxu0 0.0
  %160 = vmatprep.subr.mxu0 0.0
  %161 = vmatpush1.msra.mxu0 0.0
  %162 = vmatprep.subr.mxu0 0.0
  %163 = vmatpush1.msra.mxu0 0.0
  %164 = vmatprep.subr.mxu0 0.0
  %165 = vmatpush1.msra.mxu0 0.0
  %166 = vmatprep.subr.mxu0 0.0
  %167 = vmatpush1.msra.mxu0 0.0
  %168 = vmatprep.subr.mxu0 0.0
  %169 = vmatpush1.msra.mxu0 0.0
  %170 = vmatprep.subr.mxu0 0.0
  %171 = vmatpush1.msra.mxu0 0.0
  %172 = vmatprep.subr.mxu0 0.0
  %173 = vmatpush1.msra.mxu0 0.0
  %174 = vmatprep.subr.mxu0 0.0
  %175 = vmatpush1.msra.mxu0 0.0
  %176 = vmatprep.subr.mxu0 0.0
  %177 = vmatpush1.msra.mxu0 0.0
  %178 = vmatprep.subr.mxu0 0.0
  %179 = vmatpush1.msra.mxu0 0.0
  %180 = vmatprep.subr.mxu0 0.0
  %181 = vmatpush1.msra.mxu0 0.0
  %182 = vmatprep.subr.mxu0 0.0
  %183 = vmatpush1.msra.mxu0 0.0
  %184 = vmatprep.subr.mxu0 0.0
  %185 = vmatpush1.msra.mxu0 0.0
  %186 = vmatprep.subr.mxu0 0.0
  %187 = vmatpush1.msra.mxu0 0.0
  %188 = vmatprep.subr.mxu0 0.0
  %189 = vmatpush1.msra.mxu0 0.0
  %190 = vmatprep.subr.mxu0 0.0
  %191 = vmatpush1.msra.mxu0 0.0
  %192 = vmatprep.subr.mxu0 0.0
  %193 = vmatpush1.msra.mxu0 0.0
  %194 = vmatprep.subr.mxu0 0.0
  %195 = vmatpush1.msra.mxu0 0.0
  %196 = vmatprep.subr.mxu0 0.0
  %197 = vmatpush1.msra.mxu0 0.0
  %198 = vmatprep.subr.mxu0 0.0
  %199 = vmatpush1.msra.mxu0 0.0
  %200 = vmatprep.subr.mxu0 0.0
  %201 = vmatpush1.msra.mxu0 0.0
  %202 = vmatprep.subr.mxu0 0.0
  %203 = vmatpush1.msra.mxu0 0.0
  %204 = vmatprep.mubr.f32.mxu0 0.0
  %205 = vmatmul.mubr.f32.gmra.mrb[0].mxu0 %v138
  %v206 = vpop.f32.mrb[0].mxu0
  %v207 = vadd.f32 %v134, %v206
  %v208 = vpop.f32.mrb[0].mxu0
  %209 = vdwg.mxu0
  %v210 = vmax.f32 %v207, 0.0
  %v211 = vld [vmem:[%s5] sm:$0xff]
  %v212 = vld [vmem:[%s5 + $0x8] sm:$0xff]
  %v213 = vld [vmem:[%s5 + $0x10] sm:$0xff]
  %v214 = vld [vmem:[%s5 + $0x18] sm:$0xff]
  %v215 = vld [vmem:[%s5 + $0x20] sm:$0xff]
  %v216 = vld [vmem:[%s5 + $0x28] sm:$0xff]
  %v217 = vld [vmem:[%s5 + $0x30] sm:$0xff]
  %v218 = vld [vmem:[%s5 + $0x38] sm:$0xff]
  %v219 = vld [vmem:[%s6] sm:$0x1]
  %v221 = vlaneseq
  %v222 = vshrl.u32 %v221, 7
  %v223 = vsub.s32 0, %v222
  %v224 = vrot.slane %v219, %v223
  %v227 = vsel %vm136, %v210, 0
  %229 = vmatprep.subr.mxu0 0.0
  %230 = vmatpush1.msra.mxu0 %v211
  %231 = vmatprep.subr.mxu0 0.0
  %232 = vmatpush1.msra.mxu0 %v212
  %233 = vmatprep.subr.mxu0 0.0
  %234 = vmatpush1.msra.mxu0 %v213
  %235 = vmatprep.subr.mxu0 0.0
  %236 = vmatpush1.msra.mxu0 %v214
  %237 = vmatprep.subr.mxu0 0.0
  %238 = vmatpush1.msra.mxu0 %v215
  %239 = vmatprep.subr.mxu0 0.0
  %240 = vmatpush1.msra.mxu0 %v216
  %241 = vmatprep.subr.mxu0 0.0
  %242 = vmatpush1.msra.mxu0 %v217
  %243 = vmatprep.subr.mxu0 0.0
  %244 = vmatpush1.msra.mxu0 %v218
  %245 = vmatprep.subr.mxu0 0.0
  %246 = vmatpush1.msra.mxu0 0.0
  %247 = vmatprep.subr.mxu0 0.0
  %248 = vmatpush1.msra.mxu0 0.0
  %249 = vmatprep.subr.mxu0 0.0
  %250 = vmatpush1.msra.mxu0 0.0
  %251 = vmatprep.subr.mxu0 0.0
  %252 = vmatpush1.msra.mxu0 0.0
  %253 = vmatprep.subr.mxu0 0.0
  %254 = vmatpush1.msra.mxu0 0.0
  %255 = vmatprep.subr.mxu0 0.0
  %256 = vmatpush1.msra.mxu0 0.0
  %257 = vmatprep.subr.mxu0 0.0
  %258 = vmatpush1.msra.mxu0 0.0
  %259 = vmatprep.subr.mxu0 0.0
  %260 = vmatpush1.msra.mxu0 0.0
  %261 = vmatprep.subr.mxu0 0.0
  %262 = vmatpush1.msra.mxu0 0.0
  %263 = vmatprep.subr.mxu0 0.0
  %264 = vmatpush1.msra.mxu0 0.0
  %265 = vmatprep.subr.mxu0 0.0
  %266 = vmatpush1.msra.mxu0 0.0
  %267 = vmatprep.subr.mxu0 0.0
  %268 = vmatpush1.msra.mxu0 0.0
  %269 = vmatprep.subr.mxu0 0.0
  %270 = vmatpush1.msra.mxu0 0.0
  %271 = vmatprep.subr.mxu0 0.0
  %272 = vmatpush1.msra.mxu0 0.0
  %273 = vmatprep.subr.mxu0 0.0
  %274 = vmatpush1.msra.mxu0 0.0
  %275 = vmatprep.subr.mxu0 0.0
  %276 = vmatpush1.msra.mxu0 0.0
  %277 = vmatprep.subr.mxu0 0.0
  %278 = vmatpush1.msra.mxu0 0.0
  %279 = vmatprep.subr.mxu0 0.0
  %280 = vmatpush1.msra.mxu0 0.0
  %281 = vmatprep.subr.mxu0 0.0
  %282 = vmatpush1.msra.mxu0 0.0
  %283 = vmatprep.subr.mxu0 0.0
  %284 = vmatpush1.msra.mxu0 0.0
  %285 = vmatprep.subr.mxu0 0.0
  %286 = vmatpush1.msra.mxu0 0.0
  %287 = vmatprep.subr.mxu0 0.0
  %288 = vmatpush1.msra.mxu0 0.0
  %289 = vmatprep.subr.mxu0 0.0
  %290 = vmatpush1.msra.mxu0 0.0
  %291 = vmatprep.subr.mxu0 0.0
  %292 = vmatpush1.msra.mxu0 0.0
  %293 = vmatprep.mubr.f32.mxu0 0.0
  %294 = vmatmul.mubr.f32.gmra.mrb[0].mxu0 %v227
  %v295 = vpop.f32.mrb[0].mxu0
  %v296 = vadd.f32 %v224, %v295
  %v297 = vpop.f32.mrb[0].mxu0
  %298 = vdwg.mxu0
  %v299 = vxor.u32 %v296, 2147483648
  %v300 = vmul.f32 %v299, 1.442695
  %v301 = vpow.pop %v300
  %v302 = vadd.f32 %v301, 1.0
  %v303 = vrcp.pop %v302
  %v304 = vmul.f32 1.0, %v303
  %vm305 = vcmask 31744
  %306 = vst.msk [vmem:[%s7] sm:$0xff] %vm305, %v304
  // Predicated region
  $region30: #{tpu_custom_call.1} parent=0 // pred_check
    _
  $region31: #{tpu_custom_call.1} parent=0 // pred_check_branch
    %308 = sbr.rel (0) target = $region33
  $region32: #{tpu_custom_call.1} parent=0 // pred_region
    _
  $region33: #{tpu_custom_call.1} parent=0 // pred_fallthru
    _
  // Predicated region
  $region34: #{tpu_custom_call.1} parent=0 // pred_check
    _
  $region35: #{tpu_custom_call.1} parent=0 // pred_check_branch
    %310 = sbr.rel (0) target = $region37
  $region36: #{tpu_custom_call.1} parent=0 // pred_region
    _
  $region37: #{tpu_custom_call.1} parent=0 // pred_fallthru
    _

</llo_original>
